<compile_context>
chip_gen: v7x
topology: tpu7x:2x2x1
jax: 0.10.0
libtpu: 0.0.40
codegen_flags: <defaults>
</compile_context>

<pallas_src>
import jax
import jax.numpy as jnp
from jax.experimental import pallas as pl
from jax.experimental.pallas import tpu as pltpu


def _round_up(x, m):
    return ((x + m - 1) // m) * m


def mlp_kernel(x_ref, w1_ref, b1_ref, w2t_ref, b2_ref, o_ref):
    # Layer 1: (TILE_B, 8) @ (8, N) on the MXU with f32 accumulation.
    x = x_ref[...]
    h = jnp.dot(x, w1_ref[...], preferred_element_type=jnp.float32)
    h = jnp.maximum(h + b1_ref[...], 0.0)                       # bias + ReLU (VPU)
    # Layer 2 (N=1): VPU multiply + lane reduction instead of an N=1 MXU matmul.
    y = jnp.sum(h * w2t_ref[...], axis=-1, keepdims=True) + b2_ref[...]
    o_ref[...] = y.astype(o_ref.dtype)


def mymodel_forward(x, w1, b1, w2, b2, *, tile_b=512):
    """x: [B, 8]; w1: [8, N]; b1: [N]; w2: [N, 1]; b2: [1]  ->  [B, 1]."""
    B, in_features = x.shape
    n = w1.shape[1]

    # Batch tile must be a multiple of 8 (sublane rule); pad B up to a tile multiple.
    tile = min(tile_b, _round_up(B, 8))
    b_pad = _round_up(B, tile)
    if b_pad != B:
        x = jnp.pad(x, ((0, b_pad - B), (0, 0)))
    num_tiles = b_pad // tile

    b1_2d = b1.reshape(1, n)
    w2t = w2.reshape(1, n)          # (N, 1) -> (1, N) for the broadcast multiply
    b2_2d = b2.reshape(1, 1)

    flops = b_pad * n * (2 * in_features + 4) + b_pad
    bytes_accessed = (b_pad * in_features + b_pad + in_features * n + 2 * n + 1) * 4

    out = pl.pallas_call(
        mlp_kernel,
        out_shape=jax.ShapeDtypeStruct((b_pad, 1), jnp.float32),
        grid=(num_tiles,),
        in_specs=[
            pl.BlockSpec((tile, in_features), lambda i: (i, 0)),  # x tile streams
            pl.BlockSpec((in_features, n), lambda i: (0, 0)),     # weights stay resident
            pl.BlockSpec((1, n), lambda i: (0, 0)),
            pl.BlockSpec((1, n), lambda i: (0, 0)),
            pl.BlockSpec((1, 1), lambda i: (0, 0)),
        ],
        out_specs=pl.BlockSpec((tile, 1), lambda i: (i, 0)),
        compiler_params=pltpu.CompilerParams(
            dimension_semantics=("parallel",)),   # megacore shards the batch grid on v7x
        cost_estimate=pl.CostEstimate(
            flops=flops, transcendentals=0, bytes_accessed=bytes_accessed),
    )(x, w1, b1_2d, w2t, b2_2d)

    return out[:B]


def init_params(key, in_features=8, reluN=32, out_features=1):
    # Deterministic init mimicking PyTorch Linear defaults (uniform +/- 1/sqrt(fan_in)).
    k1, k2, k3, k4 = jax.random.split(key, 4)
    bound1 = 1.0 / jnp.sqrt(in_features)
    bound2 = 1.0 / jnp.sqrt(reluN)
    w1 = jax.random.uniform(k1, (in_features, reluN), jnp.float32, -bound1, bound1)
    b1 = jax.random.uniform(k2, (reluN,), jnp.float32, -bound1, bound1)
    w2 = jax.random.uniform(k3, (reluN, out_features), jnp.float32, -bound2, bound2)
    b2 = jax.random.uniform(k4, (out_features,), jnp.float32, -bound2, bound2)
    return w1, b1, w2, b2


if __name__ == "__main__":
    key = jax.random.PRNGKey(0)
    kx1, kx2, kp = jax.random.split(key, 3)

    IN, RELU_N = 8, 32
    w1, b1, w2, b2 = init_params(kp, IN, RELU_N, 1)

    def ref_fn(x):
        return jnp.maximum(x @ w1 + b1, 0.0) @ w2 + b2

    # Small batch (single tile, no padding).
    x_small = jax.random.normal(kx1, (8, IN), jnp.float32)
    out_small = jax.block_until_ready(mymodel_forward(x_small, w1, b1, w2, b2))
    assert out_small.shape == (8, 1)
    assert jnp.allclose(out_small, ref_fn(x_small), atol=1e-5, rtol=1e-4)

    # Larger, non-tile-multiple batch: exercises padding + multi-tile grid + pipelining.
    x_big = jax.random.normal(kx2, (1000, IN), jnp.float32)
    out_big = jax.block_until_ready(mymodel_forward(x_big, w1, b1, w2, b2))
    assert out_big.shape == (1000, 1)
    assert jnp.allclose(out_big, ref_fn(x_big), atol=1e-5, rtol=1e-4)

    print("KERNEL_OK")
</pallas_src>

<mosaic_0001>
module attributes {stable_mosaic.version = 11 : i64} {
  func.func @mlp_kernel(%arg0: i32, %arg1: memref<8x8xf32, #tpu.memory_space<vmem>>, %arg2: memref<8x32xf32, #tpu.memory_space<vmem>>, %arg3: memref<1x32xf32, #tpu.memory_space<vmem>>, %arg4: memref<1x32xf32, #tpu.memory_space<vmem>>, %arg5: memref<1x1xf32, #tpu.memory_space<vmem>>, %arg6: memref<8x1xf32, #tpu.memory_space<vmem>>) attributes {dimension_semantics = [#tpu.dimension_semantics<parallel>], iteration_bounds = array<i64: 1>, scalar_prefetch = 0 : i64, scratch_operands = 0 : i64, tpu.core_type = #tpu.core_type<tc>, window_params = [{transform_indices = @transform_0, window_bounds = array<i64: 8, 8>}, {pipeline_mode = #tpu.pipeline_mode<synchronous>, transform_indices = @transform_1, window_bounds = array<i64: 8, 32>}, {pipeline_mode = #tpu.pipeline_mode<synchronous>, transform_indices = @transform_2, window_bounds = array<i64: 1, 32>}, {pipeline_mode = #tpu.pipeline_mode<synchronous>, transform_indices = @transform_3, window_bounds = array<i64: 1, 32>}, {pipeline_mode = #tpu.pipeline_mode<synchronous>, transform_indices = @transform_4, window_bounds = array<i64: 1, 1>}, {transform_indices = @transform_5, window_bounds = array<i64: 8, 1>}]} {
    %c0 = arith.constant 0 : index
    %c0_0 = arith.constant 0 : index
    %0 = vector.load %arg1[%c0, %c0_0] : memref<8x8xf32, #tpu.memory_space<vmem>>, vector<8x8xf32>
    %c0_1 = arith.constant 0 : index
    %c0_2 = arith.constant 0 : index
    %1 = vector.load %arg2[%c0_1, %c0_2] : memref<8x32xf32, #tpu.memory_space<vmem>>, vector<8x32xf32>
    %cst = arith.constant dense<0.000000e+00> : vector<8x32xf32>
    %2 = tpu.matmul %0, %1, %cst {dimension_numbers = #tpu.dot_dimension_numbers<[1], [0], [0], [1], [0, 0, 1, 1], [], []>} : vector<8x8xf32>, vector<8x32xf32>, vector<8x32xf32> -> vector<8x32xf32>
    %c0_3 = arith.constant 0 : index
    %c0_4 = arith.constant 0 : index
    %3 = vector.load %arg3[%c0_3, %c0_4] : memref<1x32xf32, #tpu.memory_space<vmem>>, vector<1x32xf32>
    %4 = vector.broadcast %3 : vector<1x32xf32> to vector<8x32xf32>
    %5 = arith.addf %2, %4 : vector<8x32xf32>
    %cst_5 = arith.constant 0.000000e+00 : f32
    %6 = vector.broadcast %cst_5 : f32 to vector<8x32xf32>
    %7 = arith.maximumf %5, %6 : vector<8x32xf32>
    %c0_6 = arith.constant 0 : index
    %c0_7 = arith.constant 0 : index
    %8 = vector.load %arg4[%c0_6, %c0_7] : memref<1x32xf32, #tpu.memory_space<vmem>>, vector<1x32xf32>
    %9 = vector.broadcast %8 : vector<1x32xf32> to vector<8x32xf32>
    %10 = arith.mulf %7, %9 : vector<8x32xf32>
    %cst_8 = arith.constant dense<0.000000e+00> : vector<8xf32>
    %11 = vector.multi_reduction <add>, %10, %cst_8 [1] : vector<8x32xf32> to vector<8xf32>
    %12 = vector.shape_cast %11 : vector<8xf32> to vector<8x1xf32>
    %c0_9 = arith.constant 0 : index
    %c0_10 = arith.constant 0 : index
    %13 = vector.load %arg5[%c0_9, %c0_10] : memref<1x1xf32, #tpu.memory_space<vmem>>, vector<1x1xf32>
    %14 = vector.broadcast %13 : vector<1x1xf32> to vector<8x1xf32>
    %15 = arith.addf %12, %14 : vector<8x1xf32>
    %c0_11 = arith.constant 0 : index
    %c0_12 = arith.constant 0 : index
    %16 = vector.load %arg6[%c0_11, %c0_12] : memref<8x1xf32, #tpu.memory_space<vmem>>, vector<8x1xf32>
    tpu.vector_store %arg6[%c0_11, %c0_12], %15 {strides = array<i32>} : memref<8x1xf32, #tpu.memory_space<vmem>>, vector<8x1xf32>,
    return
  }
  func.func @transform_0(%arg0: i32) -> (i32, i32) {
    %c0_i32 = arith.constant 0 : i32
    %c0_i32_0 = arith.constant 0 : i32
    return %arg0, %c0_i32 : i32, i32
  }
  func.func @transform_1(%arg0: i32) -> (i32, i32) {
    %c0_i32 = arith.constant 0 : i32
    %c0_i32_0 = arith.constant 0 : i32
    %c0_i32_1 = arith.constant 0 : i32
    return %c0_i32, %c0_i32_0 : i32, i32
  }
  func.func @transform_2(%arg0: i32) -> (i32, i32) {
    %c0_i32 = arith.constant 0 : i32
    %c0_i32_0 = arith.constant 0 : i32
    %c0_i32_1 = arith.constant 0 : i32
    return %c0_i32, %c0_i32_0 : i32, i32
  }
  func.func @transform_3(%arg0: i32) -> (i32, i32) {
    %c0_i32 = arith.constant 0 : i32
    %c0_i32_0 = arith.constant 0 : i32
    %c0_i32_1 = arith.constant 0 : i32
    return %c0_i32, %c0_i32_0 : i32, i32
  }
  func.func @transform_4(%arg0: i32) -> (i32, i32) {
    %c0_i32 = arith.constant 0 : i32
    %c0_i32_0 = arith.constant 0 : i32
    %c0_i32_1 = arith.constant 0 : i32
    return %c0_i32, %c0_i32_0 : i32, i32
  }
  func.func @transform_5(%arg0: i32) -> (i32, i32) {
    %c0_i32 = arith.constant 0 : i32
    %c0_i32_0 = arith.constant 0 : i32
    return %arg0, %c0_i32 : i32, i32
  }
}

</mosaic_0001>

<llo_original>
// kernel: tpu_custom_call.1
$region0: #{tpu_custom_call.1}
  #allocation0 [shape = 'u32[]', space=smem, size = 0x4, offset = 0x4, fixed_abs, tag = 'smem constant byte address 0x4 - core index']
  #allocation1 [shape = 'u32[144,128]{1,0:T(1,128)}', space=vmem, size = 0x12000, scoped, tag = 'internal scratch']
  #allocation2 [shape = 'f32[1,1]{1,0:T(1,128)S(1)}', space=vmem, size = 0x200, scoped, tag = 'scoped memory for tpu_custom_call.1']
  %s0 = inlined_call_operand.hbm [shape: f32[8,8], index: 0, kind: input, shape index: {}]
  %s1 = inlined_call_operand.hbm [shape: f32[8,32], index: 1, kind: input, shape index: {}]
  %s2 = inlined_call_operand.vmem [shape: f32[1,32], index: 2, kind: input, shape index: {}]
  %s3 = inlined_call_operand.vmem [shape: f32[1,32], index: 3, kind: input, shape index: {}]
  %s4 = inlined_call_operand.<no memory space> [shape: f32[1,1], index: 4, kind: input, shape index: {}]
  %s5 = inlined_call_operand.vmem [shape: f32[8,1], index: 5, kind: output, shape index: {}]
  %s6 = sld [smem:[#allocation0]]
  $region38: #{tpu_custom_call.1} parent=0
    _
  %s8 = ssub.s32 1, %s6
  %s9 = scalar_select 0, %s8, %s6
  %v10 = vstv %s4
  %11 = vst [vmem:[#allocation2] sm:$0x1] %v10
  $region1: #{tpu_custom_call.1} parent=0
    #allocation3 [shape = 'u8[4096]{0}', space=vmem, size = 0x1000, scoped, tag = 'input window, operand 0, single buffered']
    #allocation4 [shape = 's32[1]{0}', space=sflag, size = 0x4, scoped, tag = 'scoped memory for tpu_custom_call.1']
    #allocation5 [shape = 'u8[4096]{0}', space=vmem, size = 0x1000, scoped, tag = 'input window, operand 1, single buffered']
    #allocation6 [shape = 's32[1]{0}', space=sflag, size = 0x4, scoped, tag = 'scoped memory for tpu_custom_call.1']
    %12 = vsyncpa [#allocation4], 0
    %13 = vsyncpa [#allocation6], 0
    // Predicated region
    $region2: #{tpu_custom_call.1} parent=1 // pred_check
      _
    $region3: #{tpu_custom_call.1} parent=1 // pred_check_branch
      %15 = sbr.rel (0) target = $region5
    $region4: #{tpu_custom_call.1} parent=1 // pred_region
      %s17 = ssub.s32 128, 128
      %18 = vsyncadd [#allocation4], %s17
      %s20 = sshll.u32 [#allocation3], 4
      %s21 = int_to_ptr.vmem [resolvable:$true] %s20
      %23 = dma.hbm_to_vmem [thread:$0]  %s0, 128, %s21, [#allocation4]
    $region5: #{tpu_custom_call.1} parent=1 // pred_fallthru
      _
    // Predicated region
    $region6: #{tpu_custom_call.1} parent=1 // pred_check
      _
    $region7: #{tpu_custom_call.1} parent=1 // pred_check_branch
      %25 = sbr.rel (0) target = $region9
    $region8: #{tpu_custom_call.1} parent=1 // pred_region
      %s27 = ssub.s32 128, 128
      %28 = vsyncadd [#allocation6], %s27
      %s30 = sshll.u32 [#allocation5], 4
      %s31 = int_to_ptr.vmem [resolvable:$true] %s30
      %33 = dma.hbm_to_vmem [thread:$0]  %s1, 128, %s31, [#allocation6]
    $region9: #{tpu_custom_call.1} parent=1 // pred_fallthru
      _
    // Predicated region
    $region10: #{tpu_custom_call.1} parent=1 // pred_check
      _
    $region11: #{tpu_custom_call.1} parent=1 // pred_check_branch
      %35 = sbr.rel (0) target = $region13
    $region12: #{tpu_custom_call.1} parent=1 // pred_region
      _
    $region13: #{tpu_custom_call.1} parent=1 // pred_fallthru
      _
    // Predicated region
    $region14: #{tpu_custom_call.1} parent=1 // pred_check
      _
    $region15: #{tpu_custom_call.1} parent=1 // pred_check_branch
      %37 = sbr.rel (0) target = $region17
    $region16: #{tpu_custom_call.1} parent=1 // pred_region
      _
    $region17: #{tpu_custom_call.1} parent=1 // pred_fallthru
      _
    // Predicated region
    $region18: #{tpu_custom_call.1} parent=1 // pred_check
      _
    $region19: #{tpu_custom_call.1} parent=1 // pred_check_branch
      %39 = sbr.rel (0) target = $region21
    $region20: #{tpu_custom_call.1} parent=1 // pred_region
      _
    $region21: #{tpu_custom_call.1} parent=1 // pred_fallthru
      _
    // Predicated region
    $region22: #{tpu_custom_call.1} parent=1 // pred_check
      _
    $region23: #{tpu_custom_call.1} parent=1 // pred_check_branch
      %41 = sbr.rel (0) target = $region25
    $region24: #{tpu_custom_call.1} parent=1 // pred_region
      %42 = dma.done [#allocation4], 128
    $region25: #{tpu_custom_call.1} parent=1 // pred_fallthru
      _
    // Predicated region
    $region26: #{tpu_custom_call.1} parent=1 // pred_check
      _
    $region27: #{tpu_custom_call.1} parent=1 // pred_check_branch
      %44 = sbr.rel (0) target = $region29
    $region28: #{tpu_custom_call.1} parent=1 // pred_region
      %45 = dma.done [#allocation6], 128
    $region29: #{tpu_custom_call.1} parent=1 // pred_fallthru
      _
    %v46 = vld [vmem:[#allocation3] sm:$0xff]
    %v47 = vld [vmem:[#allocation5] sm:$0xff]
    %v48 = vld [vmem:[%s2] sm:$0x1]
    %v50 = vlaneseq
    %v51 = vshrl.u32 %v50, 7
    %v52 = vsub.s32 0, %v51
    %v53 = vrot.slane %v48, %v52
    %vm55 = vcmask 64512
    %v57 = vsel %vm55, %v46, 0
    %59 = vmatprep.subr.mxu0 0.0
    %60 = vmatpush1.msra.mxu0 %v47
    %61 = vmatprep.subr.mxu0 0.0
    %62 = vmatpush1.msra.mxu0 0.0
    %63 = vmatprep.subr.mxu0 0.0
    %64 = vmatpush1.msra.mxu0 0.0
    %65 = vmatprep.subr.mxu0 0.0
    %66 = vmatpush1.msra.mxu0 0.0
    %67 = vmatprep.subr.mxu0 0.0
    %68 = vmatpush1.msra.mxu0 0.0
    %69 = vmatprep.subr.mxu0 0.0
    %70 = vmatpush1.msra.mxu0 0.0
    %71 = vmatprep.subr.mxu0 0.0
    %72 = vmatpush1.msra.mxu0 0.0
    %73 = vmatprep.subr.mxu0 0.0
    %74 = vmatpush1.msra.mxu0 0.0
    %75 = vmatprep.subr.mxu0 0.0
    %76 = vmatpush1.msra.mxu0 0.0
    %77 = vmatprep.subr.mxu0 0.0
    %78 = vmatpush1.msra.mxu0 0.0
    %79 = vmatprep.subr.mxu0 0.0
    %80 = vmatpush1.msra.mxu0 0.0
    %81 = vmatprep.subr.mxu0 0.0
    %82 = vmatpush1.msra.mxu0 0.0
    %83 = vmatprep.subr.mxu0 0.0
    %84 = vmatpush1.msra.mxu0 0.0
    %85 = vmatprep.subr.mxu0 0.0
    %86 = vmatpush1.msra.mxu0 0.0
    %87 = vmatprep.subr.mxu0 0.0
    %88 = vmatpush1.msra.mxu0 0.0
    %89 = vmatprep.subr.mxu0 0.0
    %90 = vmatpush1.msra.mxu0 0.0
    %91 = vmatprep.subr.mxu0 0.0
    %92 = vmatpush1.msra.mxu0 0.0
    %93 = vmatprep.subr.mxu0 0.0
    %94 = vmatpush1.msra.mxu0 0.0
    %95 = vmatprep.subr.mxu0 0.0
    %96 = vmatpush1.msra.mxu0 0.0
    %97 = vmatprep.subr.mxu0 0.0
    %98 = vmatpush1.msra.mxu0 0.0
    %99 = vmatprep.subr.mxu0 0.0
    %100 = vmatpush1.msra.mxu0 0.0
    %101 = vmatprep.subr.mxu0 0.0
    %102 = vmatpush1.msra.mxu0 0.0
    %103 = vmatprep.subr.mxu0 0.0
    %104 = vmatpush1.msra.mxu0 0.0
    %105 = vmatprep.subr.mxu0 0.0
    %106 = vmatpush1.msra.mxu0 0.0
    %107 = vmatprep.subr.mxu0 0.0
    %108 = vmatpush1.msra.mxu0 0.0
    %109 = vmatprep.subr.mxu0 0.0
    %110 = vmatpush1.msra.mxu0 0.0
    %111 = vmatprep.subr.mxu0 0.0
    %112 = vmatpush1.msra.mxu0 0.0
    %113 = vmatprep.subr.mxu0 0.0
    %114 = vmatpush1.msra.mxu0 0.0
    %115 = vmatprep.subr.mxu0 0.0
    %116 = vmatpush1.msra.mxu0 0.0
    %117 = vmatprep.subr.mxu0 0.0
    %118 = vmatpush1.msra.mxu0 0.0
    %119 = vmatprep.subr.mxu0 0.0
    %120 = vmatpush1.msra.mxu0 0.0
    %121 = vmatprep.subr.mxu0 0.0
    %122 = vmatpush1.msra.mxu0 0.0
    %123 = vmatprep.mubr.f32.mxu0 0.0
    %124 = vmatmul.mubr.f32.gmra.mrb[0].mxu0 %v57
    %v125 = vpop.f32.mrb[0].mxu0
    %v126 = vadd.f32 %v53, %v125
    %v127 = vpop.f32.mrb[0].mxu0
    %128 = vdwg.mxu0
    %v129 = vmax.f32 %v126, 0.0
    %v130 = vld [vmem:[%s3] sm:$0x1]
    %v132 = vlaneseq
    %v133 = vshrl.u32 %v132, 7
    %v134 = vsub.s32 0, %v133
    %v135 = vrot.slane %v130, %v134
    %v137 = vmul.f32 %v129, %v135
    %vm138 = vcmask 261120
    %v139 = vsel %vm138, %v137, 0.0
    %140 = vadd.xlane.f32.xlu0 %v139
    %v141 = vpop.xlane.xlu0 %140
    %v142 = vld [vmem:[#allocation2] sm:$0x1]
    %v144 = vlaneseq
    %v145 = vshrl.u32 %v144, 7
    %v146 = vsub.s32 0, %v145
    %v147 = vrot.slane %v142, %v146
    %v149 = vadd.f32 %v141, %v147
    %vm150 = vcmask 7168
    %151 = vst.msk [vmem:[%s5] sm:$0xff] %vm150, %v149
    // Predicated region
    $region30: #{tpu_custom_call.1} parent=1 // pred_check
      _
    $region31: #{tpu_custom_call.1} parent=1 // pred_check_branch
      %153 = sbr.rel (0) target = $region33
    $region32: #{tpu_custom_call.1} parent=1 // pred_region
      _
    $region33: #{tpu_custom_call.1} parent=1 // pred_fallthru
      _
    // Predicated region
    $region34: #{tpu_custom_call.1} parent=1 // pred_check
      _
    $region35: #{tpu_custom_call.1} parent=1 // pred_check_branch
      %155 = sbr.rel (0) target = $region37
    $region36: #{tpu_custom_call.1} parent=1 // pred_region
      _
    $region37: #{tpu_custom_call.1} parent=1 // pred_fallthru
      _
    %156 = vsyncpa [#allocation4], 1
    %157 = vsyncpa [#allocation6], 1

</llo_original>
